<compile_context>
chip_gen: v7x
topology: tpu7x:2x2x1
jax: 0.10.0
libtpu: 0.0.40
codegen_flags: <defaults>
</compile_context>

<pallas_src>
import math

import jax
import jax.numpy as jnp
import numpy as np
from jax.experimental import pallas as pl
from jax.experimental.pallas import tpu as pltpu

_EPS = 1e-5
_SUB = 8      # sublane granule
_LANE = 128   # lane granule


def _rup(n, m):
    return ((n + m - 1) // m) * m


def _pad2(a, rows, cols):
    return jnp.pad(a, ((0, rows - a.shape[0]), (0, cols - a.shape[1])))


# ----------------------------- Pallas kernel ------------------------------- #
def _make_kernel(C, in_chs, init1, k2b, L, N, TILE):
    """Build the GhostBottleneck kernel for fixed (static) sizes.

    C      : padded channel count (multiple of 8) shared by all weight tiles.
    in_chs : real input channels.
    init1  : real channels of ghost1's primary conv.
    k2b    : mid_chs - init1 (columns of w2p acting on ghost1's cheap branch).
    L      : sequence length per sample (lane axis folds batch*length).
    N      : real folded lane count (B*L).
    TILE   : lane tile width (multiple of lcm(L, 128)).
    """
    TAP0, BIAS0 = 0, 9          # column layout of the merged params table
    pow2 = (L & (L - 1)) == 0

    def kernel(x_ref, w_ref, p_ref, o1_ref, o2_ref):
        x = x_ref[...]                       # (C, TILE), batch folded into lanes

        # ---- per-tile edge / validity masks from the global lane index ------
        # (computed in-kernel: no HBM edges stream; hoisted to full (C, TILE)
        # once and reused by all three depthwise convs)
        gidx = (pl.program_id(0) * TILE
                + jax.lax.broadcasted_iota(jnp.int32, (C, TILE), 1))
        pos = (gidx & (L - 1)) if pow2 else (gidx % L)
        valid = gidx < N
        lmask = jnp.logical_and(pos != 0, valid)        # left neighbour exists
        rmask = jnp.logical_and(pos != (L - 1), valid)  # right neighbour exists

        def tap(tb, j):                      # depthwise taps (params cols 0..8)
            return p_ref[:, TAP0 + tb + j:TAP0 + tb + j + 1]

        def bias(j):                         # folded BN biases (params cols 9..15)
            return p_ref[:, BIAS0 + j:BIAS0 + j + 1]

        def dw3(v, tb):
            # depthwise conv, k=3, stride=1, pad=1 (per channel): neighbours via
            # XLU lane rotations + sample-edge masks.  roll wrap-around at the
            # tile edge is safe because TILE % L == 0, so tile edges are sample
            # edges and those lanes are masked anyway.
            left = jnp.where(lmask, pltpu.roll(v, 1, axis=1), 0.0)
            right = jnp.where(rmask, pltpu.roll(v, TILE - 1, axis=1), 0.0)
            return left * tap(tb, 0) + v * tap(tb, 1) + right * tap(tb, 2)

        def conv1x1(wb, v, k):
            # contraction is tiny (k <= 8): unrolled VPU broadcast-MAC in exact
            # f32 (MXU would be <1% utilised here and pay push/drain latency).
            acc = w_ref[:, wb:wb + 1] * v[0:1, :]
            for i in range(1, k):
                acc = acc + w_ref[:, wb + i:wb + i + 1] * v[i:i + 1, :]
            return acc

        # ---- ghost1 (use_act=True): 1x1+BN+ReLU, depthwise k3 + BN + ReLU ----
        # (BN scales are pre-folded into the weights; only bias remains.)
        x1 = jnp.maximum(conv1x1(0 * C, x, in_chs) + bias(0), 0.0)
        x2 = jnp.maximum(dw3(x1, 0) + bias(1), 0.0)

        # ---- ghost2 (use_act=False): concat([x1,x2])[:mid] folded into the ----
        # split 1x1 weights, so no (mid, L) scratch round-trip is needed.
        y1 = conv1x1(1 * C, x1, init1) + conv1x1(2 * C, x2, k2b) + bias(2)
        y2 = dw3(y1, 3) + bias(3)

        # ---- shortcut (in_chs != out_chs): depthwise+BN then 1x1+BN, with the
        # 1x1 rows split host-side to line up with the y1 / y2 output blocks.
        sd = dw3(x, 6) + bias(4)

        # two full, unmasked (C, TILE) block stores; the channel interleave of
        # concat([y1, y2])[:out_chs] is done by the wrapper.
        o1_ref[...] = y1 + conv1x1(3 * C, sd, in_chs) + bias(5)
        o2_ref[...] = y2 + conv1x1(4 * C, sd, in_chs) + bias(6)

    return kernel


# ------------------------------- wrapper ----------------------------------- #
def _fold_bn(bn):
    gamma, beta, mean, var = bn
    s = gamma / jnp.sqrt(var + _EPS)
    return s, beta - mean * s


def ghost_bottleneck_pallas(x, rp, mid_chs, out_chs, *, lane_tile_target=2048):
    """x: (B, Cin, L) float32; rp: raw conv weights + BatchNorm tuples."""
    B, in_chs, L = x.shape
    init1 = rp['w1p'].shape[0]
    init2 = rp['w2p'].shape[0]
    k2b = mid_chs - init1                      # cheap-branch columns used by w2p
    assert 0 < k2b <= init1 and init2 <= out_chs <= 2 * init2

    C = _rup(max(in_chs, init1, init2), _SUB)  # shared padded channel count
    N = B * L

    # Lane tile: a multiple of lcm(L, 128) so every sample sits entirely inside
    # one tile (roll-based depthwise conv stays correct once tiled) and every
    # store is a full, unmasked (8,128) tile.  Capped at ~2048 lanes: big enough
    # for ~85%+ of HBM roofline, small enough (few hundred KiB double-buffered)
    # for v7x's 64 MiB VMEM as well as v6e/v5e's 128 MiB.
    gran = (L * _LANE) // math.gcd(L, _LANE)
    TILE = min(_rup(N, gran), _rup(lane_tile_target, gran))
    assert TILE % L == 0 and TILE % _LANE == 0
    Npad = _rup(N, TILE)
    grid = (Npad // TILE,)

    # ---- fold BN scales into conv weights / depthwise taps (inference BN) ----
    s1p, b1p = _fold_bn(rp['bn1p']); s1d, b1d = _fold_bn(rp['bn1d'])
    s2p, b2p = _fold_bn(rp['bn2p']); s2d, b2d = _fold_bn(rp['bn2d'])
    ssd, bsd = _fold_bn(rp['bnsd']); ssp, bsp = _fold_bn(rp['bnsp'])

    w1p = rp['w1p'][:, :, 0] * s1p[:, None]           # (init1, in_chs)
    w2p = rp['w2p'][:, :, 0] * s2p[:, None]           # (init2, mid_chs)
    wsp = rp['wsp'][:, :, 0] * ssp[:, None]           # (out_chs, in_chs)
    t1 = rp['w1d'][:, 0, :] * s1d[:, None]            # (init1, 3)
    t2 = rp['w2d'][:, 0, :] * s2d[:, None]            # (init2, 3)
    ts = rp['wsd'][:, 0, :] * ssd[:, None]            # (in_chs, 3)

    # ---- pack parameters into two small, 8-row-padded resident tables --------
    wmats = jnp.concatenate([
        _pad2(w1p, C, C),                              # ghost1 primary
        _pad2(w2p[:, :init1], C, C),                   # ghost2 primary (x1 half)
        _pad2(w2p[:, init1:mid_chs], C, C),            # ghost2 primary (x2 half)
        _pad2(wsp[:init2], C, C),                      # shortcut 1x1 rows -> o1
        _pad2(wsp[init2:out_chs], C, C),               # shortcut 1x1 rows -> o2
    ], axis=1)                                         # (C, 5*C)
    params = jnp.concatenate([
        _pad2(t1, C, 3), _pad2(t2, C, 3), _pad2(ts, C, 3),        # taps: cols 0..8
        _pad2(b1p[:, None], C, 1), _pad2(b1d[:, None], C, 1),     # biases: cols 9..15
        _pad2(b2p[:, None], C, 1), _pad2(b2d[:, None], C, 1),
        _pad2(bsd[:, None], C, 1),
        _pad2(bsp[:init2, None], C, 1), _pad2(bsp[init2:out_chs, None], C, 1),
    ], axis=1)                                         # (C, 16)

    # ---- lane-dense activation layout: (B, Cin, L) -> (C, Npad) --------------
    # (For stacked GhostBottlenecks, keep this slab persistent between blocks
    #  instead of relayouting per call.)
    x2d = _pad2(jnp.transpose(x, (1, 0, 2)).reshape(in_chs, N), C, Npad)

    kernel = _make_kernel(C, in_chs, init1, k2b, L, N, TILE)

    flops = 2 * N * C * (3 * in_chs + init1 + k2b + 9)
    bytes_accessed = 4 * (3 * C * Npad + 5 * C * C + 16 * C)

    o1, o2 = pl.pallas_call(
        kernel,
        grid=grid,
        out_shape=(jax.ShapeDtypeStruct((C, Npad), jnp.float32),
                   jax.ShapeDtypeStruct((C, Npad), jnp.float32)),
        in_specs=[
            pl.BlockSpec((C, TILE), lambda i: (0, i)),      # x: streamed lane tiles
            pl.BlockSpec((C, 5 * C), lambda i: (0, 0)),     # 1x1 weight table (resident)
            pl.BlockSpec((C, 16), lambda i: (0, 0)),        # taps + biases (resident)
        ],
        out_specs=(
            pl.BlockSpec((C, TILE), lambda i: (0, i)),
            pl.BlockSpec((C, TILE), lambda i: (0, i)),
        ),
        compiler_params=pltpu.CompilerParams(
            dimension_semantics=("parallel",)),             # megacore-shard the lane axis
        cost_estimate=pl.CostEstimate(
            flops=flops, transcendentals=0, bytes_accessed=bytes_accessed),
    )(x2d, wmats, params)

    # ---- wrapper-side channel interleave + layout restore --------------------
    y = jnp.concatenate([o1[:init2], o2[:out_chs - init2]], axis=0)[:, :N]
    return y.reshape(out_chs, B, L).transpose(1, 0, 2)


# ----------------------- pure-JAX reference (for check) -------------------- #
def _conv1d(x, w, stride=1, padding=0, groups=1):
    return jax.lax.conv_general_dilated(
        x, w, window_strides=(stride,), padding=[(padding, padding)],
        dimension_numbers=('NCH', 'OIH', 'NCH'),
        feature_group_count=groups,
        precision=jax.lax.Precision.HIGHEST)


def _bn_eval(x, bn):
    gamma, beta, mean, var = bn
    inv = gamma / jnp.sqrt(var + _EPS)
    return (x - mean[None, :, None]) * inv[None, :, None] + beta[None, :, None]


def _ghost_module_ref(x, out_chs, wp, bnp, wd, bnd, use_act):
    init = wp.shape[0]
    x1 = _bn_eval(_conv1d(x, wp, padding=0), bnp)
    if use_act:
        x1 = jax.nn.relu(x1)
    x2 = _bn_eval(_conv1d(x1, wd, padding=1, groups=init), bnd)
    if use_act:
        x2 = jax.nn.relu(x2)
    return jnp.concatenate([x1, x2], axis=1)[:, :out_chs, :]


def ghost_bottleneck_ref(x, rp, mid_chs, out_chs):
    g1 = _ghost_module_ref(x, mid_chs, rp['w1p'], rp['bn1p'], rp['w1d'], rp['bn1d'], True)
    g2 = _ghost_module_ref(g1, out_chs, rp['w2p'], rp['bn2p'], rp['w2d'], rp['bn2d'], False)
    in_chs = x.shape[1]
    sc = _bn_eval(_conv1d(x, rp['wsd'], padding=1, groups=in_chs), rp['bnsd'])
    sc = _bn_eval(_conv1d(sc, rp['wsp'], padding=0), rp['bnsp'])
    return g2 + sc


# ----------------------------- parameter setup ----------------------------- #
def _make_bn(key, c):
    k1, k2, k3, k4 = jax.random.split(key, 4)
    gamma = jax.random.uniform(k1, (c,), jnp.float32, 0.5, 1.5)
    beta = 0.1 * jax.random.normal(k2, (c,), jnp.float32)
    mean = 0.1 * jax.random.normal(k3, (c,), jnp.float32)
    var = jax.random.uniform(k4, (c,), jnp.float32, 0.5, 1.5)
    return (gamma, beta, mean, var)


def init_params(key, in_chs, mid_chs, out_chs):
    init1 = math.ceil(mid_chs / 2)     # GhostModule ratio=2
    new1 = init1
    init2 = math.ceil(out_chs / 2)
    new2 = init2
    ks = jax.random.split(key, 12)
    return {
        'w1p': 0.3 * jax.random.normal(ks[0], (init1, in_chs, 1), jnp.float32),
        'bn1p': _make_bn(ks[1], init1),
        'w1d': 0.3 * jax.random.normal(ks[2], (new1, 1, 3), jnp.float32),
        'bn1d': _make_bn(ks[3], new1),
        'w2p': 0.3 * jax.random.normal(ks[4], (init2, mid_chs, 1), jnp.float32),
        'bn2p': _make_bn(ks[5], init2),
        'w2d': 0.3 * jax.random.normal(ks[6], (new2, 1, 3), jnp.float32),
        'bn2d': _make_bn(ks[7], new2),
        'wsd': 0.3 * jax.random.normal(ks[8], (in_chs, 1, 3), jnp.float32),
        'bnsd': _make_bn(ks[9], in_chs),
        'wsp': 0.3 * jax.random.normal(ks[10], (out_chs, in_chs, 1), jnp.float32),
        'bnsp': _make_bn(ks[11], out_chs),
    }


# ---------------------------------- main ----------------------------------- #
if __name__ == "__main__":
    IN_CHS, MID_CHS, OUT_CHS = 4, 8, 6   # in != out -> conv shortcut path exercised
    B, L = 2, 16

    key = jax.random.PRNGKey(0)
    kx, kparam = jax.random.split(key)
    x = jax.random.normal(kx, (B, IN_CHS, L), jnp.float32)
    rp = init_params(kparam, IN_CHS, MID_CHS, OUT_CHS)

    out = ghost_bottleneck_pallas(x, rp, MID_CHS, OUT_CHS)
    out = jax.block_until_ready(out)

    ref = ghost_bottleneck_ref(x, rp, MID_CHS, OUT_CHS)
    assert out.shape == (B, OUT_CHS, L)
    np.testing.assert_allclose(np.asarray(out), np.asarray(ref), rtol=1e-2, atol=1e-2)
    print("KERNEL_OK")
</pallas_src>

<mosaic_0001>
module attributes {stable_mosaic.version = 11 : i64} {
  func.func @kernel(%arg0: i32, %arg1: memref<8x128xf32, #tpu.memory_space<vmem>>, %arg2: memref<8x40xf32, #tpu.memory_space<vmem>>, %arg3: memref<8x16xf32, #tpu.memory_space<vmem>>, %arg4: memref<8x128xf32, #tpu.memory_space<vmem>>, %arg5: memref<8x128xf32, #tpu.memory_space<vmem>>) attributes {dimension_semantics = [#tpu.dimension_semantics<parallel>], iteration_bounds = array<i64: 1>, scalar_prefetch = 0 : i64, scratch_operands = 0 : i64, tpu.core_type = #tpu.core_type<tc>, window_params = [{transform_indices = @transform_0, window_bounds = array<i64: 8, 128>}, {pipeline_mode = #tpu.pipeline_mode<synchronous>, transform_indices = @transform_1, window_bounds = array<i64: 8, 40>}, {pipeline_mode = #tpu.pipeline_mode<synchronous>, transform_indices = @transform_2, window_bounds = array<i64: 8, 16>}, {transform_indices = @transform_3, window_bounds = array<i64: 8, 128>}, {transform_indices = @transform_4, window_bounds = array<i64: 8, 128>}]} {
    %c0 = arith.constant 0 : index
    %c0_0 = arith.constant 0 : index
    %0 = vector.load %arg1[%c0, %c0_0] : memref<8x128xf32, #tpu.memory_space<vmem>>, vector<8x128xf32>
    %c128_i32 = arith.constant 128 : i32
    %1 = arith.muli %arg0, %c128_i32 : i32
    %2 = tpu.iota {dimensions = array<i32: 1>} : vector<8x128xi32>
    %3 = vector.broadcast %1 : i32 to vector<8x128xi32>
    %4 = arith.addi %3, %2 : vector<8x128xi32>
    %c15_i32 = arith.constant 15 : i32
    %5 = vector.broadcast %c15_i32 : i32 to vector<8x128xi32>
    %6 = arith.andi %4, %5 : vector<8x128xi32>
    %c32_i32 = arith.constant 32 : i32
    %7 = vector.broadcast %c32_i32 : i32 to vector<8x128xi32>
    %8 = arith.cmpi slt, %4, %7 : vector<8x128xi32>
    %c0_i32 = arith.constant 0 : i32
    %9 = vector.broadcast %c0_i32 : i32 to vector<8x128xi32>
    %10 = arith.cmpi ne, %6, %9 : vector<8x128xi32>
    %11 = arith.andi %10, %8 : vector<8x128xi1>
    %c15_i32_1 = arith.constant 15 : i32
    %12 = vector.broadcast %c15_i32_1 : i32 to vector<8x128xi32>
    %13 = arith.cmpi ne, %6, %12 : vector<8x128xi32>
    %14 = arith.andi %13, %8 : vector<8x128xi1>
    %c0_2 = arith.constant 0 : index
    %c0_3 = arith.constant 0 : index
    %15 = vector.load %arg2[%c0_2, %c0_3] : memref<8x40xf32, #tpu.memory_space<vmem>>, vector<8x1xf32>
    %16 = vector.extract_strided_slice %0 {offsets = [0, 0], sizes = [1, 128], strides = [1, 1]} : vector<8x128xf32> to vector<1x128xf32>
    %17 = vector.broadcast %15 : vector<8x1xf32> to vector<8x128xf32>
    %18 = vector.broadcast %16 : vector<1x128xf32> to vector<8x128xf32>
    %19 = arith.mulf %17, %18 : vector<8x128xf32>
    %c0_4 = arith.constant 0 : index
    %c1 = arith.constant 1 : index
    %20 = vector.load %arg2[%c0_4, %c1] : memref<8x40xf32, #tpu.memory_space<vmem>>, vector<8x1xf32>
    %21 = vector.extract_strided_slice %0 {offsets = [1, 0], sizes = [1, 128], strides = [1, 1]} : vector<8x128xf32> to vector<1x128xf32>
    %22 = vector.broadcast %20 : vector<8x1xf32> to vector<8x128xf32>
    %23 = vector.broadcast %21 : vector<1x128xf32> to vector<8x128xf32>
    %24 = arith.mulf %22, %23 : vector<8x128xf32>
    %25 = arith.addf %19, %24 : vector<8x128xf32>
    %c0_5 = arith.constant 0 : index
    %c2 = arith.constant 2 : index
    %26 = vector.load %arg2[%c0_5, %c2] : memref<8x40xf32, #tpu.memory_space<vmem>>, vector<8x1xf32>
    %27 = vector.extract_strided_slice %0 {offsets = [2, 0], sizes = [1, 128], strides = [1, 1]} : vector<8x128xf32> to vector<1x128xf32>
    %28 = vector.broadcast %26 : vector<8x1xf32> to vector<8x128xf32>
    %29 = vector.broadcast %27 : vector<1x128xf32> to vector<8x128xf32>
    %30 = arith.mulf %28, %29 : vector<8x128xf32>
    %31 = arith.addf %25, %30 : vector<8x128xf32>
    %c0_6 = arith.constant 0 : index
    %c3 = arith.constant 3 : index
    %32 = vector.load %arg2[%c0_6, %c3] : memref<8x40xf32, #tpu.memory_space<vmem>>, vector<8x1xf32>
    %33 = vector.extract_strided_slice %0 {offsets = [3, 0], sizes = [1, 128], strides = [1, 1]} : vector<8x128xf32> to vector<1x128xf32>
    %34 = vector.broadcast %32 : vector<8x1xf32> to vector<8x128xf32>
    %35 = vector.broadcast %33 : vector<1x128xf32> to vector<8x128xf32>
    %36 = arith.mulf %34, %35 : vector<8x128xf32>
    %37 = arith.addf %31, %36 : vector<8x128xf32>
    %c0_7 = arith.constant 0 : index
    %c9 = arith.constant 9 : index
    %38 = vector.load %arg3[%c0_7, %c9] : memref<8x16xf32, #tpu.memory_space<vmem>>, vector<8x1xf32>
    %39 = vector.broadcast %38 : vector<8x1xf32> to vector<8x128xf32>
    %40 = arith.addf %37, %39 : vector<8x128xf32>
    %cst = arith.constant 0.000000e+00 : f32
    %41 = vector.broadcast %cst : f32 to vector<8x128xf32>
    %42 = arith.maximumf %40, %41 : vector<8x128xf32>
    %c1_i32 = arith.constant 1 : i32
    %43 = tpu.dynamic_rotate %42 by %c1_i32 dim 1 : vector<8x128xf32>, i32 -> vector<8x128xf32>
    %cst_8 = arith.constant 0.000000e+00 : f32
    %44 = vector.broadcast %cst_8 : f32 to vector<8x128xf32>
    %45 = arith.select %11, %43, %44 : vector<8x128xi1>, vector<8x128xf32>
    %c127_i32 = arith.constant 127 : i32
    %46 = tpu.dynamic_rotate %42 by %c127_i32 dim 1 : vector<8x128xf32>, i32 -> vector<8x128xf32>
    %cst_9 = arith.constant 0.000000e+00 : f32
    %47 = vector.broadcast %cst_9 : f32 to vector<8x128xf32>
    %48 = arith.select %14, %46, %47 : vector<8x128xi1>, vector<8x128xf32>
    %c0_10 = arith.constant 0 : index
    %c0_11 = arith.constant 0 : index
    %49 = vector.load %arg3[%c0_10, %c0_11] : memref<8x16xf32, #tpu.memory_space<vmem>>, vector<8x1xf32>
    %50 = vector.broadcast %49 : vector<8x1xf32> to vector<8x128xf32>
    %51 = arith.mulf %45, %50 : vector<8x128xf32>
    %c0_12 = arith.constant 0 : index
    %c1_13 = arith.constant 1 : index
    %52 = vector.load %arg3[%c0_12, %c1_13] : memref<8x16xf32, #tpu.memory_space<vmem>>, vector<8x1xf32>
    %53 = vector.broadcast %52 : vector<8x1xf32> to vector<8x128xf32>
    %54 = arith.mulf %42, %53 : vector<8x128xf32>
    %55 = arith.addf %51, %54 : vector<8x128xf32>
    %c0_14 = arith.constant 0 : index
    %c2_15 = arith.constant 2 : index
    %56 = vector.load %arg3[%c0_14, %c2_15] : memref<8x16xf32, #tpu.memory_space<vmem>>, vector<8x1xf32>
    %57 = vector.broadcast %56 : vector<8x1xf32> to vector<8x128xf32>
    %58 = arith.mulf %48, %57 : vector<8x128xf32>
    %59 = arith.addf %55, %58 : vector<8x128xf32>
    %c0_16 = arith.constant 0 : index
    %c10 = arith.constant 10 : index
    %60 = vector.load %arg3[%c0_16, %c10] : memref<8x16xf32, #tpu.memory_space<vmem>>, vector<8x1xf32>
    %61 = vector.broadcast %60 : vector<8x1xf32> to vector<8x128xf32>
    %62 = arith.addf %59, %61 : vector<8x128xf32>
    %cst_17 = arith.constant 0.000000e+00 : f32
    %63 = vector.broadcast %cst_17 : f32 to vector<8x128xf32>
    %64 = arith.maximumf %62, %63 : vector<8x128xf32>
    %c0_18 = arith.constant 0 : index
    %c8 = arith.constant 8 : index
    %65 = vector.load %arg2[%c0_18, %c8] : memref<8x40xf32, #tpu.memory_space<vmem>>, vector<8x1xf32>
    %66 = vector.extract_strided_slice %42 {offsets = [0, 0], sizes = [1, 128], strides = [1, 1]} : vector<8x128xf32> to vector<1x128xf32>
    %67 = vector.broadcast %65 : vector<8x1xf32> to vector<8x128xf32>
    %68 = vector.broadcast %66 : vector<1x128xf32> to vector<8x128xf32>
    %69 = arith.mulf %67, %68 : vector<8x128xf32>
    %c0_19 = arith.constant 0 : index
    %c9_20 = arith.constant 9 : index
    %70 = vector.load %arg2[%c0_19, %c9_20] : memref<8x40xf32, #tpu.memory_space<vmem>>, vector<8x1xf32>
    %71 = vector.extract_strided_slice %42 {offsets = [1, 0], sizes = [1, 128], strides = [1, 1]} : vector<8x128xf32> to vector<1x128xf32>
    %72 = vector.broadcast %70 : vector<8x1xf32> to vector<8x128xf32>
    %73 = vector.broadcast %71 : vector<1x128xf32> to vector<8x128xf32>
    %74 = arith.mulf %72, %73 : vector<8x128xf32>
    %75 = arith.addf %69, %74 : vector<8x128xf32>
    %c0_21 = arith.constant 0 : index
    %c10_22 = arith.constant 10 : index
    %76 = vector.load %arg2[%c0_21, %c10_22] : memref<8x40xf32, #tpu.memory_space<vmem>>, vector<8x1xf32>
    %77 = vector.extract_strided_slice %42 {offsets = [2, 0], sizes = [1, 128], strides = [1, 1]} : vector<8x128xf32> to vector<1x128xf32>
    %78 = vector.broadcast %76 : vector<8x1xf32> to vector<8x128xf32>
    %79 = vector.broadcast %77 : vector<1x128xf32> to vector<8x128xf32>
    %80 = arith.mulf %78, %79 : vector<8x128xf32>
    %81 = arith.addf %75, %80 : vector<8x128xf32>
    %c0_23 = arith.constant 0 : index
    %c11 = arith.constant 11 : index
    %82 = vector.load %arg2[%c0_23, %c11] : memref<8x40xf32, #tpu.memory_space<vmem>>, vector<8x1xf32>
    %83 = vector.extract_strided_slice %42 {offsets = [3, 0], sizes = [1, 128], strides = [1, 1]} : vector<8x128xf32> to vector<1x128xf32>
    %84 = vector.broadcast %82 : vector<8x1xf32> to vector<8x128xf32>
    %85 = vector.broadcast %83 : vector<1x128xf32> to vector<8x128xf32>
    %86 = arith.mulf %84, %85 : vector<8x128xf32>
    %87 = arith.addf %81, %86 : vector<8x128xf32>
    %c0_24 = arith.constant 0 : index
    %c16 = arith.constant 16 : index
    %88 = vector.load %arg2[%c0_24, %c16] : memref<8x40xf32, #tpu.memory_space<vmem>>, vector<8x1xf32>
    %89 = vector.extract_strided_slice %64 {offsets = [0, 0], sizes = [1, 128], strides = [1, 1]} : vector<8x128xf32> to vector<1x128xf32>
    %90 = vector.broadcast %88 : vector<8x1xf32> to vector<8x128xf32>
    %91 = vector.broadcast %89 : vector<1x128xf32> to vector<8x128xf32>
    %92 = arith.mulf %90, %91 : vector<8x128xf32>
    %c0_25 = arith.constant 0 : index
    %c17 = arith.constant 17 : index
    %93 = vector.load %arg2[%c0_25, %c17] : memref<8x40xf32, #tpu.memory_space<vmem>>, vector<8x1xf32>
    %94 = vector.extract_strided_slice %64 {offsets = [1, 0], sizes = [1, 128], strides = [1, 1]} : vector<8x128xf32> to vector<1x128xf32>
    %95 = vector.broadcast %93 : vector<8x1xf32> to vector<8x128xf32>
    %96 = vector.broadcast %94 : vector<1x128xf32> to vector<8x128xf32>
    %97 = arith.mulf %95, %96 : vector<8x128xf32>
    %98 = arith.addf %92, %97 : vector<8x128xf32>
    %c0_26 = arith.constant 0 : index
    %c18 = arith.constant 18 : index
    %99 = vector.load %arg2[%c0_26, %c18] : memref<8x40xf32, #tpu.memory_space<vmem>>, vector<8x1xf32>
    %100 = vector.extract_strided_slice %64 {offsets = [2, 0], sizes = [1, 128], strides = [1, 1]} : vector<8x128xf32> to vector<1x128xf32>
    %101 = vector.broadcast %99 : vector<8x1xf32> to vector<8x128xf32>
    %102 = vector.broadcast %100 : vector<1x128xf32> to vector<8x128xf32>
    %103 = arith.mulf %101, %102 : vector<8x128xf32>
    %104 = arith.addf %98, %103 : vector<8x128xf32>
    %c0_27 = arith.constant 0 : index
    %c19 = arith.constant 19 : index
    %105 = vector.load %arg2[%c0_27, %c19] : memref<8x40xf32, #tpu.memory_space<vmem>>, vector<8x1xf32>
    %106 = vector.extract_strided_slice %64 {offsets = [3, 0], sizes = [1, 128], strides = [1, 1]} : vector<8x128xf32> to vector<1x128xf32>
    %107 = vector.broadcast %105 : vector<8x1xf32> to vector<8x128xf32>
    %108 = vector.broadcast %106 : vector<1x128xf32> to vector<8x128xf32>
    %109 = arith.mulf %107, %108 : vector<8x128xf32>
    %110 = arith.addf %104, %109 : vector<8x128xf32>
    %111 = arith.addf %87, %110 : vector<8x128xf32>
    %c0_28 = arith.constant 0 : index
    %c11_29 = arith.constant 11 : index
    %112 = vector.load %arg3[%c0_28, %c11_29] : memref<8x16xf32, #tpu.memory_space<vmem>>, vector<8x1xf32>
    %113 = vector.broadcast %112 : vector<8x1xf32> to vector<8x128xf32>
    %114 = arith.addf %111, %113 : vector<8x128xf32>
    %c1_i32_30 = arith.constant 1 : i32
    %115 = tpu.dynamic_rotate %114 by %c1_i32_30 dim 1 : vector<8x128xf32>, i32 -> vector<8x128xf32>
    %cst_31 = arith.constant 0.000000e+00 : f32
    %116 = vector.broadcast %cst_31 : f32 to vector<8x128xf32>
    %117 = arith.select %11, %115, %116 : vector<8x128xi1>, vector<8x128xf32>
    %c127_i32_32 = arith.constant 127 : i32
    %118 = tpu.dynamic_rotate %114 by %c127_i32_32 dim 1 : vector<8x128xf32>, i32 -> vector<8x128xf32>
    %cst_33 = arith.constant 0.000000e+00 : f32
    %119 = vector.broadcast %cst_33 : f32 to vector<8x128xf32>
    %120 = arith.select %14, %118, %119 : vector<8x128xi1>, vector<8x128xf32>
    %c0_34 = arith.constant 0 : index
    %c3_35 = arith.constant 3 : index
    %121 = vector.load %arg3[%c0_34, %c3_35] : memref<8x16xf32, #tpu.memory_space<vmem>>, vector<8x1xf32>
    %122 = vector.broadcast %121 : vector<8x1xf32> to vector<8x128xf32>
    %123 = arith.mulf %117, %122 : vector<8x128xf32>
    %c0_36 = arith.constant 0 : index
    %c4 = arith.constant 4 : index
    %124 = vector.load %arg3[%c0_36, %c4] : memref<8x16xf32, #tpu.memory_space<vmem>>, vector<8x1xf32>
    %125 = vector.broadcast %124 : vector<8x1xf32> to vector<8x128xf32>
    %126 = arith.mulf %114, %125 : vector<8x128xf32>
    %127 = arith.addf %123, %126 : vector<8x128xf32>
    %c0_37 = arith.constant 0 : index
    %c5 = arith.constant 5 : index
    %128 = vector.load %arg3[%c0_37, %c5] : memref<8x16xf32, #tpu.memory_space<vmem>>, vector<8x1xf32>
    %129 = vector.broadcast %128 : vector<8x1xf32> to vector<8x128xf32>
    %130 = arith.mulf %120, %129 : vector<8x128xf32>
    %131 = arith.addf %127, %130 : vector<8x128xf32>
    %c0_38 = arith.constant 0 : index
    %c12 = arith.constant 12 : index
    %132 = vector.load %arg3[%c0_38, %c12] : memref<8x16xf32, #tpu.memory_space<vmem>>, vector<8x1xf32>
    %133 = vector.broadcast %132 : vector<8x1xf32> to vector<8x128xf32>
    %134 = arith.addf %131, %133 : vector<8x128xf32>
    %c1_i32_39 = arith.constant 1 : i32
    %135 = tpu.dynamic_rotate %0 by %c1_i32_39 dim 1 : vector<8x128xf32>, i32 -> vector<8x128xf32>
    %cst_40 = arith.constant 0.000000e+00 : f32
    %136 = vector.broadcast %cst_40 : f32 to vector<8x128xf32>
    %137 = arith.select %11, %135, %136 : vector<8x128xi1>, vector<8x128xf32>
    %c127_i32_41 = arith.constant 127 : i32
    %138 = tpu.dynamic_rotate %0 by %c127_i32_41 dim 1 : vector<8x128xf32>, i32 -> vector<8x128xf32>
    %cst_42 = arith.constant 0.000000e+00 : f32
    %139 = vector.broadcast %cst_42 : f32 to vector<8x128xf32>
    %140 = arith.select %14, %138, %139 : vector<8x128xi1>, vector<8x128xf32>
    %c0_43 = arith.constant 0 : index
    %c6 = arith.constant 6 : index
    %141 = vector.load %arg3[%c0_43, %c6] : memref<8x16xf32, #tpu.memory_space<vmem>>, vector<8x1xf32>
    %142 = vector.broadcast %141 : vector<8x1xf32> to vector<8x128xf32>
    %143 = arith.mulf %137, %142 : vector<8x128xf32>
    %c0_44 = arith.constant 0 : index
    %c7 = arith.constant 7 : index
    %144 = vector.load %arg3[%c0_44, %c7] : memref<8x16xf32, #tpu.memory_space<vmem>>, vector<8x1xf32>
    %145 = vector.broadcast %144 : vector<8x1xf32> to vector<8x128xf32>
    %146 = arith.mulf %0, %145 : vector<8x128xf32>
    %147 = arith.addf %143, %146 : vector<8x128xf32>
    %c0_45 = arith.constant 0 : index
    %c8_46 = arith.constant 8 : index
    %148 = vector.load %arg3[%c0_45, %c8_46] : memref<8x16xf32, #tpu.memory_space<vmem>>, vector<8x1xf32>
    %149 = vector.broadcast %148 : vector<8x1xf32> to vector<8x128xf32>
    %150 = arith.mulf %140, %149 : vector<8x128xf32>
    %151 = arith.addf %147, %150 : vector<8x128xf32>
    %c0_47 = arith.constant 0 : index
    %c13 = arith.constant 13 : index
    %152 = vector.load %arg3[%c0_47, %c13] : memref<8x16xf32, #tpu.memory_space<vmem>>, vector<8x1xf32>
    %153 = vector.broadcast %152 : vector<8x1xf32> to vector<8x128xf32>
    %154 = arith.addf %151, %153 : vector<8x128xf32>
    %c0_48 = arith.constant 0 : index
    %c24 = arith.constant 24 : index
    %155 = vector.load %arg2[%c0_48, %c24] : memref<8x40xf32, #tpu.memory_space<vmem>>, vector<8x1xf32>
    %156 = vector.extract_strided_slice %154 {offsets = [0, 0], sizes = [1, 128], strides = [1, 1]} : vector<8x128xf32> to vector<1x128xf32>
    %157 = vector.broadcast %155 : vector<8x1xf32> to vector<8x128xf32>
    %158 = vector.broadcast %156 : vector<1x128xf32> to vector<8x128xf32>
    %159 = arith.mulf %157, %158 : vector<8x128xf32>
    %c0_49 = arith.constant 0 : index
    %c25 = arith.constant 25 : index
    %160 = vector.load %arg2[%c0_49, %c25] : memref<8x40xf32, #tpu.memory_space<vmem>>, vector<8x1xf32>
    %161 = vector.extract_strided_slice %154 {offsets = [1, 0], sizes = [1, 128], strides = [1, 1]} : vector<8x128xf32> to vector<1x128xf32>
    %162 = vector.broadcast %160 : vector<8x1xf32> to vector<8x128xf32>
    %163 = vector.broadcast %161 : vector<1x128xf32> to vector<8x128xf32>
    %164 = arith.mulf %162, %163 : vector<8x128xf32>
    %165 = arith.addf %159, %164 : vector<8x128xf32>
    %c0_50 = arith.constant 0 : index
    %c26 = arith.constant 26 : index
    %166 = vector.load %arg2[%c0_50, %c26] : memref<8x40xf32, #tpu.memory_space<vmem>>, vector<8x1xf32>
    %167 = vector.extract_strided_slice %154 {offsets = [2, 0], sizes = [1, 128], strides = [1, 1]} : vector<8x128xf32> to vector<1x128xf32>
    %168 = vector.broadcast %166 : vector<8x1xf32> to vector<8x128xf32>
    %169 = vector.broadcast %167 : vector<1x128xf32> to vector<8x128xf32>
    %170 = arith.mulf %168, %169 : vector<8x128xf32>
    %171 = arith.addf %165, %170 : vector<8x128xf32>
    %c0_51 = arith.constant 0 : index
    %c27 = arith.constant 27 : index
    %172 = vector.load %arg2[%c0_51, %c27] : memref<8x40xf32, #tpu.memory_space<vmem>>, vector<8x1xf32>
    %173 = vector.extract_strided_slice %154 {offsets = [3, 0], sizes = [1, 128], strides = [1, 1]} : vector<8x128xf32> to vector<1x128xf32>
    %174 = vector.broadcast %172 : vector<8x1xf32> to vector<8x128xf32>
    %175 = vector.broadcast %173 : vector<1x128xf32> to vector<8x128xf32>
    %176 = arith.mulf %174, %175 : vector<8x128xf32>
    %177 = arith.addf %171, %176 : vector<8x128xf32>
    %178 = arith.addf %114, %177 : vector<8x128xf32>
    %c0_52 = arith.constant 0 : index
    %c14 = arith.constant 14 : index
    %179 = vector.load %arg3[%c0_52, %c14] : memref<8x16xf32, #tpu.memory_space<vmem>>, vector<8x1xf32>
    %180 = vector.broadcast %179 : vector<8x1xf32> to vector<8x128xf32>
    %181 = arith.addf %178, %180 : vector<8x128xf32>
    %c0_53 = arith.constant 0 : index
    %c0_54 = arith.constant 0 : index
    %182 = vector.load %arg4[%c0_53, %c0_54] : memref<8x128xf32, #tpu.memory_space<vmem>>, vector<8x128xf32>
    tpu.vector_store %arg4[%c0_53, %c0_54], %181 {strides = array<i32>} : memref<8x128xf32, #tpu.memory_space<vmem>>, vector<8x128xf32>,
    %c0_55 = arith.constant 0 : index
    %c32 = arith.constant 32 : index
    %183 = vector.load %arg2[%c0_55, %c32] : memref<8x40xf32, #tpu.memory_space<vmem>>, vector<8x1xf32>
    %184 = vector.extract_strided_slice %154 {offsets = [0, 0], sizes = [1, 128], strides = [1, 1]} : vector<8x128xf32> to vector<1x128xf32>
    %185 = vector.broadcast %183 : vector<8x1xf32> to vector<8x128xf32>
    %186 = vector.broadcast %184 : vector<1x128xf32> to vector<8x128xf32>
    %187 = arith.mulf %185, %186 : vector<8x128xf32>
    %c0_56 = arith.constant 0 : index
    %c33 = arith.constant 33 : index
    %188 = vector.load %arg2[%c0_56, %c33] : memref<8x40xf32, #tpu.memory_space<vmem>>, vector<8x1xf32>
    %189 = vector.extract_strided_slice %154 {offsets = [1, 0], sizes = [1, 128], strides = [1, 1]} : vector<8x128xf32> to vector<1x128xf32>
    %190 = vector.broadcast %188 : vector<8x1xf32> to vector<8x128xf32>
    %191 = vector.broadcast %189 : vector<1x128xf32> to vector<8x128xf32>
    %192 = arith.mulf %190, %191 : vector<8x128xf32>
    %193 = arith.addf %187, %192 : vector<8x128xf32>
    %c0_57 = arith.constant 0 : index
    %c34 = arith.constant 34 : index
    %194 = vector.load %arg2[%c0_57, %c34] : memref<8x40xf32, #tpu.memory_space<vmem>>, vector<8x1xf32>
    %195 = vector.extract_strided_slice %154 {offsets = [2, 0], sizes = [1, 128], strides = [1, 1]} : vector<8x128xf32> to vector<1x128xf32>
    %196 = vector.broadcast %194 : vector<8x1xf32> to vector<8x128xf32>
    %197 = vector.broadcast %195 : vector<1x128xf32> to vector<8x128xf32>
    %198 = arith.mulf %196, %197 : vector<8x128xf32>
    %199 = arith.addf %193, %198 : vector<8x128xf32>
    %c0_58 = arith.constant 0 : index
    %c35 = arith.constant 35 : index
    %200 = vector.load %arg2[%c0_58, %c35] : memref<8x40xf32, #tpu.memory_space<vmem>>, vector<8x1xf32>
    %201 = vector.extract_strided_slice %154 {offsets = [3, 0], sizes = [1, 128], strides = [1, 1]} : vector<8x128xf32> to vector<1x128xf32>
    %202 = vector.broadcast %200 : vector<8x1xf32> to vector<8x128xf32>
    %203 = vector.broadcast %201 : vector<1x128xf32> to vector<8x128xf32>
    %204 = arith.mulf %202, %203 : vector<8x128xf32>
    %205 = arith.addf %199, %204 : vector<8x128xf32>
    %206 = arith.addf %134, %205 : vector<8x128xf32>
    %c0_59 = arith.constant 0 : index
    %c15 = arith.constant 15 : index
    %207 = vector.load %arg3[%c0_59, %c15] : memref<8x16xf32, #tpu.memory_space<vmem>>, vector<8x1xf32>
    %208 = vector.broadcast %207 : vector<8x1xf32> to vector<8x128xf32>
    %209 = arith.addf %206, %208 : vector<8x128xf32>
    %c0_60 = arith.constant 0 : index
    %c0_61 = arith.constant 0 : index
    %210 = vector.load %arg5[%c0_60, %c0_61] : memref<8x128xf32, #tpu.memory_space<vmem>>, vector<8x128xf32>
    tpu.vector_store %arg5[%c0_60, %c0_61], %209 {strides = array<i32>} : memref<8x128xf32, #tpu.memory_space<vmem>>, vector<8x128xf32>,
    return
  }
  func.func @transform_0(%arg0: i32) -> (i32, i32) {
    %c0_i32 = arith.constant 0 : i32
    %c0_i32_0 = arith.constant 0 : i32
    return %c0_i32, %arg0 : i32, i32
  }
  func.func @transform_1(%arg0: i32) -> (i32, i32) {
    %c0_i32 = arith.constant 0 : i32
    %c0_i32_0 = arith.constant 0 : i32
    %c0_i32_1 = arith.constant 0 : i32
    return %c0_i32, %c0_i32_0 : i32, i32
  }
  func.func @transform_2(%arg0: i32) -> (i32, i32) {
    %c0_i32 = arith.constant 0 : i32
    %c0_i32_0 = arith.constant 0 : i32
    %c0_i32_1 = arith.constant 0 : i32
    return %c0_i32, %c0_i32_0 : i32, i32
  }
  func.func @transform_3(%arg0: i32) -> (i32, i32) {
    %c0_i32 = arith.constant 0 : i32
    %c0_i32_0 = arith.constant 0 : i32
    return %c0_i32, %arg0 : i32, i32
  }
  func.func @transform_4(%arg0: i32) -> (i32, i32) {
    %c0_i32 = arith.constant 0 : i32
    %c0_i32_0 = arith.constant 0 : i32
    return %c0_i32, %arg0 : i32, i32
  }
}

</mosaic_0001>

<llo_original>
// kernel: tpu_custom_call.1
$region0: #{tpu_custom_call.1}
  #allocation0 [shape = 'u32[]', space=smem, size = 0x4, offset = 0x4, fixed_abs, tag = 'smem constant byte address 0x4 - core index']
  #allocation1 [shape = 'u32[144,128]{1,0:T(1,128)}', space=vmem, size = 0x12000, scoped, tag = 'internal scratch']
  %s0 = inlined_call_operand.hbm [shape: f32[8,128], index: 0, kind: input, shape index: {}]
  %s1 = inlined_call_operand.hbm [shape: f32[8,40], index: 1, kind: input, shape index: {}]
  %s2 = inlined_call_operand.hbm [shape: f32[8,16], index: 2, kind: input, shape index: {}]
  %s3 = inlined_call_operand.hbm [shape: f32[8,128], index: 3, kind: output, shape index: {0}]
  %s4 = inlined_call_operand.hbm [shape: f32[8,128], index: 4, kind: output, shape index: {1}]
  %5 = xla_tuple %s3, %s4
  %s6 = sld [smem:[#allocation0]]
  $region42: #{tpu_custom_call.1} parent=0
    _
  %s8 = ssub.s32 1, %s6
  %s9 = scalar_select 0, %s8, %s6
  $region1: #{tpu_custom_call.1} parent=0
    #allocation2 [shape = 'u8[4096]{0}', space=vmem, size = 0x1000, scoped, tag = 'input window, operand 0, single buffered']
    #allocation3 [shape = 's32[1]{0}', space=sflag, size = 0x4, scoped, tag = 'scoped memory for tpu_custom_call.1']
    #allocation4 [shape = 's32[1]{0}', space=sflag, size = 0x4, scoped, tag = 'scoped memory for tpu_custom_call.1']
    #allocation5 [shape = 'u8[4096]{0}', space=vmem, size = 0x1000, scoped, tag = 'input window, operand 1, single buffered']
    #allocation6 [shape = 's32[1]{0}', space=sflag, size = 0x4, scoped, tag = 'scoped memory for tpu_custom_call.1']
    #allocation7 [shape = 'u8[4096]{0}', space=vmem, size = 0x1000, scoped, tag = 'input window, operand 2, single buffered']
    #allocation8 [shape = 'u8[4096]{0}', space=vmem, size = 0x1000, scoped, tag = 'output window, operand 0, single buffered']
    #allocation9 [shape = 'u8[4096]{0}', space=vmem, size = 0x1000, scoped, tag = 'output window, operand 1, single buffered']
    #allocation10 [shape = 's32[1]{0}', space=sflag, size = 0x4, scoped, tag = 'scoped memory for tpu_custom_call.1']
    %10 = vsyncpa [#allocation3], 0
    %11 = vsyncpa [#allocation6], 0
    %12 = vsyncpa [#allocation4], 0
    %13 = vsyncpa [#allocation10], 0
    // Predicated region
    $region2: #{tpu_custom_call.1} parent=1 // pred_check
      _
    $region3: #{tpu_custom_call.1} parent=1 // pred_check_branch
      %15 = sbr.rel (0) target = $region5
    $region4: #{tpu_custom_call.1} parent=1 // pred_region
      %s17 = ssub.s32 128, 128
      %18 = vsyncadd [#allocation3], %s17
      %s20 = sshll.u32 [#allocation2], 4
      %s21 = int_to_ptr.vmem [resolvable:$true] %s20
      %23 = dma.hbm_to_vmem [thread:$0]  %s0, 128, %s21, [#allocation3]
    $region5: #{tpu_custom_call.1} parent=1 // pred_fallthru
      _
    // Predicated region
    $region6: #{tpu_custom_call.1} parent=1 // pred_check
      _
    $region7: #{tpu_custom_call.1} parent=1 // pred_check_branch
      %25 = sbr.rel (0) target = $region9
    $region8: #{tpu_custom_call.1} parent=1 // pred_region
      %s27 = ssub.s32 128, 128
      %28 = vsyncadd [#allocation6], %s27
      %s30 = sshll.u32 [#allocation5], 4
      %s31 = int_to_ptr.vmem [resolvable:$true] %s30
      %33 = dma.hbm_to_vmem [thread:$0]  %s1, 128, %s31, [#allocation6]
    $region9: #{tpu_custom_call.1} parent=1 // pred_fallthru
      _
    // Predicated region
    $region10: #{tpu_custom_call.1} parent=1 // pred_check
      _
    $region11: #{tpu_custom_call.1} parent=1 // pred_check_branch
      %35 = sbr.rel (0) target = $region13
    $region12: #{tpu_custom_call.1} parent=1 // pred_region
      %s37 = ssub.s32 128, 128
      %38 = vsyncadd [#allocation6], %s37
      %s40 = sshll.u32 [#allocation7], 4
      %s41 = int_to_ptr.vmem [resolvable:$true] %s40
      %43 = dma.hbm_to_vmem [thread:$0]  %s2, 128, %s41, [#allocation6]
    $region13: #{tpu_custom_call.1} parent=1 // pred_fallthru
      _
    // Predicated region
    $region14: #{tpu_custom_call.1} parent=1 // pred_check
      _
    $region15: #{tpu_custom_call.1} parent=1 // pred_check_branch
      %45 = sbr.rel (0) target = $region17
    $region16: #{tpu_custom_call.1} parent=1 // pred_region
      %46 = dma.done [#allocation3], 128
    $region17: #{tpu_custom_call.1} parent=1 // pred_fallthru
      _
    // Predicated region
    $region18: #{tpu_custom_call.1} parent=1 // pred_check
      _
    $region19: #{tpu_custom_call.1} parent=1 // pred_check_branch
      %48 = sbr.rel (0) target = $region21
    $region20: #{tpu_custom_call.1} parent=1 // pred_region
      %49 = dma.done [#allocation6], 128
    $region21: #{tpu_custom_call.1} parent=1 // pred_fallthru
      _
    // Predicated region
    $region22: #{tpu_custom_call.1} parent=1 // pred_check
      _
    $region23: #{tpu_custom_call.1} parent=1 // pred_check_branch
      %51 = sbr.rel (0) target = $region25
    $region24: #{tpu_custom_call.1} parent=1 // pred_region
      %52 = dma.done [#allocation6], 128
    $region25: #{tpu_custom_call.1} parent=1 // pred_fallthru
      _
    %v53 = vld [vmem:[#allocation2] sm:$0xff]
    %s54 = smul.u32 0, 128
    %v55 = vlaneseq
    %v56 = vand.u32 %v55, 127
    %v57 = vstv %s54
    %v58 = vadd.s32 %v57, %v56
    %v59 = vand.u32 %v58, 15
    %vm60 = vcmp.lt.s32.totalorder %v58, 32
    %vm61 = vcmp.ne.s32.totalorder %v59, 0
    %vm62 = vmand %vm61, %vm60
    %vm63 = vcmp.ne.s32.totalorder %v59, 15
    %vm64 = vmand %vm63, %vm60
    %v65 = vld [vmem:[#allocation5] sm:$0xff]
    %67 = vset.pattern.permute.xlu0 0
    %68 = vperm.xlu0 %67, %v65
    %v69 = vpop.permute.xlu0 %68
    %v71 = vlaneseq
    %v72 = vshrl.u32 %v71, 7
    %v73 = vsub.s32 0, %v72
    %v74 = vrot.slane %v53, %v73
    %v75 = vmul.f32 %v69, %v74
    %76 = vset.pattern.permute.xlu0 1
    %77 = vperm.xlu0 %76, %v65
    %v78 = vpop.permute.xlu0 %77
    %v80 = vlaneseq
    %v81 = vshrl.u32 %v80, 7
    %v82 = vsub.s32 1, %v81
    %v83 = vrot.slane %v53, %v82
    %v84 = vmul.f32 %v78, %v83
    %v85 = vadd.f32 %v75, %v84
    %86 = vset.pattern.permute.xlu0 2
    %87 = vperm.xlu0 %86, %v65
    %v88 = vpop.permute.xlu0 %87
    %v90 = vlaneseq
    %v91 = vshrl.u32 %v90, 7
    %v92 = vsub.s32 2, %v91
    %v93 = vrot.slane %v53, %v92
    %v94 = vmul.f32 %v88, %v93
    %v95 = vadd.f32 %v85, %v94
    %96 = vset.pattern.permute.xlu0 3
    %97 = vperm.xlu0 %96, %v65
    %v98 = vpop.permute.xlu0 %97
    %v100 = vlaneseq
    %v101 = vshrl.u32 %v100, 7
    %v102 = vsub.s32 3, %v101
    %v103 = vrot.slane %v53, %v102
    %v104 = vmul.f32 %v98, %v103
    %v105 = vadd.f32 %v95, %v104
    %v106 = vld [vmem:[#allocation7] sm:$0xff]
    %108 = vset.pattern.permute.xlu0 9
    %109 = vperm.xlu0 %108, %v106
    %v110 = vpop.permute.xlu0 %109
    %v112 = vadd.f32 %v105, %v110
    %v113 = vmax.f32 %v112, 0.0
    %114 = vrot.lane.b32.xlu0 %v113, 1
    %v115 = vpop.permute.xlu0 %114
    %v116 = vsel %vm62, %v115, 0.0
    %117 = vrot.lane.b32.xlu0 %v113, 127
    %v118 = vpop.permute.xlu0 %117
    %v119 = vsel %vm64, %v118, 0.0
    %120 = vset.pattern.permute.xlu0 0
    %121 = vperm.xlu0 %120, %v106
    %v122 = vpop.permute.xlu0 %121
    %v124 = vmul.f32 %v116, %v122
    %125 = vset.pattern.permute.xlu0 1
    %126 = vperm.xlu0 %125, %v106
    %v127 = vpop.permute.xlu0 %126
    %v129 = vmul.f32 %v113, %v127
    %v130 = vadd.f32 %v124, %v129
    %131 = vset.pattern.permute.xlu0 2
    %132 = vperm.xlu0 %131, %v106
    %v133 = vpop.permute.xlu0 %132
    %v135 = vmul.f32 %v119, %v133
    %v136 = vadd.f32 %v130, %v135
    %137 = vset.pattern.permute.xlu0 10
    %138 = vperm.xlu0 %137, %v106
    %v139 = vpop.permute.xlu0 %138
    %v141 = vadd.f32 %v136, %v139
    %v142 = vmax.f32 %v141, 0.0
    %143 = vset.pattern.permute.xlu0 8
    %144 = vperm.xlu0 %143, %v65
    %v145 = vpop.permute.xlu0 %144
    %v147 = vlaneseq
    %v148 = vshrl.u32 %v147, 7
    %v149 = vsub.s32 0, %v148
    %v150 = vrot.slane %v113, %v149
    %v151 = vmul.f32 %v145, %v150
    %152 = vset.pattern.permute.xlu0 9
    %153 = vperm.xlu0 %152, %v65
    %v154 = vpop.permute.xlu0 %153
    %v156 = vlaneseq
    %v157 = vshrl.u32 %v156, 7
    %v158 = vsub.s32 1, %v157
    %v159 = vrot.slane %v113, %v158
    %v160 = vmul.f32 %v154, %v159
    %v161 = vadd.f32 %v151, %v160
    %162 = vset.pattern.permute.xlu0 10
    %163 = vperm.xlu0 %162, %v65
    %v164 = vpop.permute.xlu0 %163
    %v166 = vlaneseq
    %v167 = vshrl.u32 %v166, 7
    %v168 = vsub.s32 2, %v167
    %v169 = vrot.slane %v113, %v168
    %v170 = vmul.f32 %v164, %v169
    %v171 = vadd.f32 %v161, %v170
    %172 = vset.pattern.permute.xlu0 11
    %173 = vperm.xlu0 %172, %v65
    %v174 = vpop.permute.xlu0 %173
    %v176 = vlaneseq
    %v177 = vshrl.u32 %v176, 7
    %v178 = vsub.s32 3, %v177
    %v179 = vrot.slane %v113, %v178
    %v180 = vmul.f32 %v174, %v179
    %v181 = vadd.f32 %v171, %v180
    %182 = vset.pattern.permute.xlu0 16
    %183 = vperm.xlu0 %182, %v65
    %v184 = vpop.permute.xlu0 %183
    %v186 = vlaneseq
    %v187 = vshrl.u32 %v186, 7
    %v188 = vsub.s32 0, %v187
    %v189 = vrot.slane %v142, %v188
    %v190 = vmul.f32 %v184, %v189
    %191 = vset.pattern.permute.xlu0 17
    %192 = vperm.xlu0 %191, %v65
    %v193 = vpop.permute.xlu0 %192
    %v195 = vlaneseq
    %v196 = vshrl.u32 %v195, 7
    %v197 = vsub.s32 1, %v196
    %v198 = vrot.slane %v142, %v197
    %v199 = vmul.f32 %v193, %v198
    %v200 = vadd.f32 %v190, %v199
    %201 = vset.pattern.permute.xlu0 18
    %202 = vperm.xlu0 %201, %v65
    %v203 = vpop.permute.xlu0 %202
    %v205 = vlaneseq
    %v206 = vshrl.u32 %v205, 7
    %v207 = vsub.s32 2, %v206
    %v208 = vrot.slane %v142, %v207
    %v209 = vmul.f32 %v203, %v208
    %v210 = vadd.f32 %v200, %v209
    %211 = vset.pattern.permute.xlu0 19
    %212 = vperm.xlu0 %211, %v65
    %v213 = vpop.permute.xlu0 %212
    %v215 = vlaneseq
    %v216 = vshrl.u32 %v215, 7
    %v217 = vsub.s32 3, %v216
    %v218 = vrot.slane %v142, %v217
    %v219 = vmul.f32 %v213, %v218
    %v220 = vadd.f32 %v210, %v219
    %v221 = vadd.f32 %v181, %v220
    %222 = vset.pattern.permute.xlu0 11
    %223 = vperm.xlu0 %222, %v106
    %v224 = vpop.permute.xlu0 %223
    %v226 = vadd.f32 %v221, %v224
    %227 = vrot.lane.b32.xlu0 %v226, 1
    %v228 = vpop.permute.xlu0 %227
    %v229 = vsel %vm62, %v228, 0.0
    %230 = vrot.lane.b32.xlu0 %v226, 127
    %v231 = vpop.permute.xlu0 %230
    %v232 = vsel %vm64, %v231, 0.0
    %233 = vset.pattern.permute.xlu0 3
    %234 = vperm.xlu0 %233, %v106
    %v235 = vpop.permute.xlu0 %234
    %v237 = vmul.f32 %v229, %v235
    %238 = vset.pattern.permute.xlu0 4
    %239 = vperm.xlu0 %238, %v106
    %v240 = vpop.permute.xlu0 %239
    %v242 = vmul.f32 %v226, %v240
    %v243 = vadd.f32 %v237, %v242
    %244 = vset.pattern.permute.xlu0 5
    %245 = vperm.xlu0 %244, %v106
    %v246 = vpop.permute.xlu0 %245
    %v248 = vmul.f32 %v232, %v246
    %v249 = vadd.f32 %v243, %v248
    %250 = vset.pattern.permute.xlu0 12
    %251 = vperm.xlu0 %250, %v106
    %v252 = vpop.permute.xlu0 %251
    %v254 = vadd.f32 %v249, %v252
    %255 = vrot.lane.b32.xlu0 %v53, 1
    %v256 = vpop.permute.xlu0 %255
    %v257 = vsel %vm62, %v256, 0.0
    %258 = vrot.lane.b32.xlu0 %v53, 127
    %v259 = vpop.permute.xlu0 %258
    %v260 = vsel %vm64, %v259, 0.0
    %261 = vset.pattern.permute.xlu0 6
    %262 = vperm.xlu0 %261, %v106
    %v263 = vpop.permute.xlu0 %262
    %v265 = vmul.f32 %v257, %v263
    %266 = vset.pattern.permute.xlu0 7
    %267 = vperm.xlu0 %266, %v106
    %v268 = vpop.permute.xlu0 %267
    %v270 = vmul.f32 %v53, %v268
    %v271 = vadd.f32 %v265, %v270
    %272 = vset.pattern.permute.xlu0 8
    %273 = vperm.xlu0 %272, %v106
    %v274 = vpop.permute.xlu0 %273
    %v276 = vmul.f32 %v260, %v274
    %v277 = vadd.f32 %v271, %v276
    %278 = vset.pattern.permute.xlu0 13
    %279 = vperm.xlu0 %278, %v106
    %v280 = vpop.permute.xlu0 %279
    %v282 = vadd.f32 %v277, %v280
    %283 = vset.pattern.permute.xlu0 24
    %284 = vperm.xlu0 %283, %v65
    %v285 = vpop.permute.xlu0 %284
    %v287 = vlaneseq
    %v288 = vshrl.u32 %v287, 7
    %v289 = vsub.s32 0, %v288
    %v290 = vrot.slane %v282, %v289
    %v291 = vmul.f32 %v285, %v290
    %292 = vset.pattern.permute.xlu0 25
    %293 = vperm.xlu0 %292, %v65
    %v294 = vpop.permute.xlu0 %293
    %v296 = vlaneseq
    %v297 = vshrl.u32 %v296, 7
    %v298 = vsub.s32 1, %v297
    %v299 = vrot.slane %v282, %v298
    %v300 = vmul.f32 %v294, %v299
    %v301 = vadd.f32 %v291, %v300
    %302 = vset.pattern.permute.xlu0 26
    %303 = vperm.xlu0 %302, %v65
    %v304 = vpop.permute.xlu0 %303
    %v306 = vlaneseq
    %v307 = vshrl.u32 %v306, 7
    %v308 = vsub.s32 2, %v307
    %v309 = vrot.slane %v282, %v308
    %v310 = vmul.f32 %v304, %v309
    %v311 = vadd.f32 %v301, %v310
    %312 = vset.pattern.permute.xlu0 27
    %313 = vperm.xlu0 %312, %v65
    %v314 = vpop.permute.xlu0 %313
    %v316 = vlaneseq
    %v317 = vshrl.u32 %v316, 7
    %v318 = vsub.s32 3, %v317
    %v319 = vrot.slane %v282, %v318
    %v320 = vmul.f32 %v314, %v319
    %v321 = vadd.f32 %v311, %v320
    %v322 = vadd.f32 %v226, %v321
    %323 = vset.pattern.permute.xlu0 14
    %324 = vperm.xlu0 %323, %v106
    %v325 = vpop.permute.xlu0 %324
    %v327 = vadd.f32 %v322, %v325
    %328 = vst [vmem:[#allocation8] sm:$0xff] %v327
    %v329 = vld [vmem:[#allocation5] sm:$0xff]
    %331 = vset.pattern.permute.xlu0 32
    %332 = vperm.xlu0 %331, %v329
    %v333 = vpop.permute.xlu0 %332
    %v335 = vmul.f32 %v333, %v290
    %336 = vset.pattern.permute.xlu0 33
    %337 = vperm.xlu0 %336, %v329
    %v338 = vpop.permute.xlu0 %337
    %v340 = vmul.f32 %v338, %v299
    %v341 = vadd.f32 %v335, %v340
    %342 = vset.pattern.permute.xlu0 34
    %343 = vperm.xlu0 %342, %v329
    %v344 = vpop.permute.xlu0 %343
    %v346 = vmul.f32 %v344, %v309
    %v347 = vadd.f32 %v341, %v346
    %348 = vset.pattern.permute.xlu0 35
    %349 = vperm.xlu0 %348, %v329
    %v350 = vpop.permute.xlu0 %349
    %v352 = vmul.f32 %v350, %v319
    %v353 = vadd.f32 %v347, %v352
    %v354 = vadd.f32 %v254, %v353
    %v355 = vld [vmem:[#allocation7] sm:$0xff]
    %357 = vset.pattern.permute.xlu0 15
    %358 = vperm.xlu0 %357, %v355
    %v359 = vpop.permute.xlu0 %358
    %v361 = vadd.f32 %v354, %v359
    %362 = vst [vmem:[#allocation9] sm:$0xff] %v361
    // Predicated region
    $region26: #{tpu_custom_call.1} parent=1 // pred_check
      _
    $region27: #{tpu_custom_call.1} parent=1 // pred_check_branch
      %364 = sbr.rel (0) target = $region29
    $region28: #{tpu_custom_call.1} parent=1 // pred_region
      %s366 = ssub.s32 128, 128
      %367 = vsyncadd [#allocation4], %s366
      %s369 = sshll.u32 [#allocation8], 4
      %s370 = int_to_ptr.vmem [resolvable:$true] %s369
      %372 = dma.vmem_to_hbm [thread:$0]  %s370, 128, %s3, [#allocation4]
    $region29: #{tpu_custom_call.1} parent=1 // pred_fallthru
      _
    // Predicated region
    $region30: #{tpu_custom_call.1} parent=1 // pred_check
      _
    $region31: #{tpu_custom_call.1} parent=1 // pred_check_branch
      %374 = sbr.rel (0) target = $region33
    $region32: #{tpu_custom_call.1} parent=1 // pred_region
      %s376 = ssub.s32 128, 128
      %377 = vsyncadd [#allocation10], %s376
      %s379 = sshll.u32 [#allocation9], 4
      %s380 = int_to_ptr.vmem [resolvable:$true] %s379
      %382 = dma.vmem_to_hbm [thread:$0]  %s380, 128, %s4, [#allocation10]
    $region33: #{tpu_custom_call.1} parent=1 // pred_fallthru
      _
    // Predicated region
    $region34: #{tpu_custom_call.1} parent=1 // pred_check
      _
    $region35: #{tpu_custom_call.1} parent=1 // pred_check_branch
      %384 = sbr.rel (0) target = $region37
    $region36: #{tpu_custom_call.1} parent=1 // pred_region
      %385 = dma.done [#allocation4], 128
    $region37: #{tpu_custom_call.1} parent=1 // pred_fallthru
      _
    // Predicated region
    $region38: #{tpu_custom_call.1} parent=1 // pred_check
      _
    $region39: #{tpu_custom_call.1} parent=1 // pred_check_branch
      %387 = sbr.rel (0) target = $region41
    $region40: #{tpu_custom_call.1} parent=1 // pred_region
      %388 = dma.done [#allocation10], 128
    $region41: #{tpu_custom_call.1} parent=1 // pred_fallthru
      _
    %389 = vsyncpa [#allocation3], 1
    %390 = vsyncpa [#allocation6], 1
    %391 = vsyncpa [#allocation4], 1
    %392 = vsyncpa [#allocation10], 1

</llo_original>
